<compile_context>
chip_gen: v5e
topology: v5e:2x2
jax: 0.10.0
libtpu: 0.0.40
codegen_flags: <defaults>
</compile_context>

<pallas_src>
import functools
import itertools
import math

import numpy as np
import jax
import jax.numpy as jnp
from jax.experimental import pallas as pl
from jax.experimental.pallas import tpu as pltpu

LANE = 128                       # TPU lane width; channel dims padded to this
VMEM_LIMIT = 32 * 1024 * 1024    # comfortably fits every tile on v5e/v6e/v7x


# ----------------------------- small helpers --------------------------------

def _ceil_to(v, m):
    return ((int(v) + m - 1) // m) * m


def _pick_tm(m, cap=512):
    """Row tile: as large as possible (<=cap, multiple of 8) while keeping the
    row grid >=2 steps when there are enough rows (v7x megacore sharding)."""
    m8 = _ceil_to(max(int(m), 1), 8)
    if m8 <= 8:
        return 8
    half = _ceil_to((m8 + 1) // 2, 8)
    return max(8, min(cap, half))


def _pad_rows_to(a, mult):
    p = (-a.shape[0]) % mult
    if p:
        a = jnp.pad(a, ((0, p),) + ((0, 0),) * (a.ndim - 1))
    return a


def _pad_last_to(a, target):
    p = target - a.shape[-1]
    if p:
        a = jnp.pad(a, ((0, 0),) * (a.ndim - 1) + ((0, p),))
    return a


def _elu(v):
    return jnp.where(v > 0, v, jnp.exp(jnp.minimum(v, 0.0)) - 1.0)


# ----------------------------- Pallas kernels --------------------------------

def _spline_msg_kernel(bd_ref, xj_ref, w_ref, o_ref, bdx_ref, *, cin, kp):
    """SplineConv edge messages via ONE MXU matmul.

    bd_ref : (TM, Kp)            bf16  spline basis (padded to 128 lanes)
    xj_ref : (TM, cin)           bf16  gathered source features (real width)
    w_ref  : (cin*Kp, coutp)     bf16  weight, row c*Kp+k holds W[k, c, :]
    o_ref  : (TM, coutp)         bf16
    bdx_ref: (TM, cin*Kp)        bf16  VMEM scratch for the outer product
    """
    bd = bd_ref[...].astype(jnp.float32)
    xj = xj_ref[...].astype(jnp.float32)
    for c in range(cin):
        bdx_ref[:, c * kp:(c + 1) * kp] = (bd * xj[:, c:c + 1]).astype(jnp.bfloat16)
    o_ref[...] = jnp.dot(bdx_ref[...], w_ref[...],
                         preferred_element_type=jnp.float32).astype(o_ref.dtype)


def _edge_linear_kernel(xj_ref, w_ref, o_ref):
    """kernel_size=1 SplineConv messages: out = xj @ W[0] (basis is identically 1)."""
    o_ref[...] = jnp.dot(xj_ref[...], w_ref[...],
                         preferred_element_type=jnp.float32).astype(o_ref.dtype)


def _fused_linear_kernel(*args, mode, has_agg, has_add2):
    """out = epilogue((x @ w + b [+ agg]), scale, shift [, add2])

    modes:
      "bn"          y = z*s + t
      "bn_elu"      y = elu(z*s + t)              (identity s/t => plain ELU)
      "elu_bn"      y = elu(z)*s + t
      "bn_add_elu"  y = elu(z*s + t + add2)       (residual add fused)
      "log_softmax" y = log_softmax(z*s + t)
    """
    x_ref, w_ref, b_ref, s_ref, t_ref = args[:5]
    k = 5
    agg = None
    add2 = None
    if has_agg:
        agg = args[k][...].astype(jnp.float32)
        k += 1
    if has_add2:
        add2 = args[k][...].astype(jnp.float32)
        k += 1
    o_ref = args[k]

    z = jnp.dot(x_ref[...], w_ref[...], preferred_element_type=jnp.float32)
    z = z + b_ref[...]
    if agg is not None:
        z = z + agg
    s = s_ref[...]
    t = t_ref[...]
    if mode == "bn":
        y = z * s + t
    elif mode == "bn_elu":
        y = _elu(z * s + t)
    elif mode == "elu_bn":
        y = _elu(z) * s + t
    elif mode == "bn_add_elu":
        y = _elu(z * s + t + add2)
    elif mode == "log_softmax":
        zz = z * s + t
        m = jnp.max(zz, axis=-1, keepdims=True)
        y = zz - (m + jnp.log(jnp.sum(jnp.exp(zz - m), axis=-1, keepdims=True)))
    else:
        y = z
    o_ref[...] = y.astype(o_ref.dtype)


# ----------------------------- kernel wrappers --------------------------------

def spline_messages(bd, xj, prep):
    """Edge-message contraction.  Returns bf16 (E_pad, coutp); caller slices."""
    E = xj.shape[0]
    cin, coutp, K, kp = prep["cin"], prep["coutp"], prep["K"], prep["kp"]
    tm = _pick_tm(E)
    xjp = _pad_rows_to(xj.astype(jnp.bfloat16), tm)
    ep = xjp.shape[0]
    cp = pltpu.CompilerParams(dimension_semantics=("parallel",),
                              vmem_limit_bytes=VMEM_LIMIT)
    if K == 1:
        return pl.pallas_call(
            _edge_linear_kernel,
            out_shape=jax.ShapeDtypeStruct((ep, coutp), jnp.bfloat16),
            grid=(ep // tm,),
            in_specs=[
                pl.BlockSpec((tm, cin), lambda i: (i, 0)),
                pl.BlockSpec((cin, coutp), lambda i: (0, 0)),
            ],
            out_specs=pl.BlockSpec((tm, coutp), lambda i: (i, 0)),
            compiler_params=cp,
        )(xjp, prep["w2"])

    bdp = _pad_rows_to(bd, tm)
    return pl.pallas_call(
        functools.partial(_spline_msg_kernel, cin=cin, kp=kp),
        out_shape=jax.ShapeDtypeStruct((ep, coutp), jnp.bfloat16),
        grid=(ep // tm,),
        in_specs=[
            pl.BlockSpec((tm, kp), lambda i: (i, 0)),
            pl.BlockSpec((tm, cin), lambda i: (i, 0)),
            pl.BlockSpec((cin * kp, coutp), lambda i: (0, 0)),
        ],
        out_specs=pl.BlockSpec((tm, coutp), lambda i: (i, 0)),
        scratch_shapes=[pltpu.VMEM((tm, cin * kp), jnp.bfloat16)],
        compiler_params=cp,
    )(bdp, xjp, prep["w2"])


def fused_linear(x, w, b, s, t, agg=None, add2=None, mode="bn",
                 out_dtype=jnp.bfloat16):
    """out = epilogue(x @ w + b [+ agg], s, t [, add2]).

    `w`/`b`/`s`/`t` are pre-padded / pre-cast at prepare_params time.
    `x` is expected at width w.shape[0] (already lane-padded for graph layers).
    """
    M, cinp = x.shape
    cout = w.shape[1]
    assert cinp == w.shape[0]
    xb = x if x.dtype == jnp.bfloat16 else x.astype(jnp.bfloat16)

    tm = _pick_tm(M)
    xb = _pad_rows_to(xb, tm)
    mp = xb.shape[0]

    operands = [xb, w, b, s, t]
    in_specs = [
        pl.BlockSpec((tm, cinp), lambda i: (i, 0)),
        pl.BlockSpec((cinp, cout), lambda i: (0, 0)),
        pl.BlockSpec((1, cout), lambda i: (0, 0)),
        pl.BlockSpec((1, cout), lambda i: (0, 0)),
        pl.BlockSpec((1, cout), lambda i: (0, 0)),
    ]
    has_agg = agg is not None
    has_add2 = add2 is not None
    if has_agg:
        operands.append(_pad_rows_to(agg, tm))
        in_specs.append(pl.BlockSpec((tm, cout), lambda i: (i, 0)))
    if has_add2:
        operands.append(_pad_rows_to(add2, tm))
        in_specs.append(pl.BlockSpec((tm, cout), lambda i: (i, 0)))

    out = pl.pallas_call(
        functools.partial(_fused_linear_kernel, mode=mode,
                          has_agg=has_agg, has_add2=has_add2),
        out_shape=jax.ShapeDtypeStruct((mp, cout), out_dtype),
        grid=(mp // tm,),
        in_specs=in_specs,
        out_specs=pl.BlockSpec((tm, cout), lambda i: (i, 0)),
        compiler_params=pltpu.CompilerParams(
            dimension_semantics=("parallel",),
            vmem_limit_bytes=VMEM_LIMIT),
    )(*operands)
    return out[:M]    # padded rows compute elu(b*s+t) != 0; must slice


# ----------------------- SplineConv (dense basis form) -----------------------

def spline_basis_dense(edge_attr, kernel_size, dim=3):
    """Dense degree-1 open B-spline basis, numpy (E, kernel_size**dim)."""
    m = kernel_size
    K = m ** dim
    p = np.clip(np.asarray(edge_attr, np.float64), 0.0, 1.0)
    v = p * max(m - 1, 0)
    k0 = np.minimum(np.floor(v), m - 1).astype(np.int64)
    frac = v - k0
    E = p.shape[0]
    bd = np.zeros((E, K), np.float64)
    for combo in itertools.product((0, 1), repeat=dim):
        b = np.ones(E)
        idx = np.zeros(E, np.int64)
        stride = 1
        for d in range(dim):
            if combo[d] == 1:
                bd_d = frac[:, d]
                id_d = np.minimum(k0[:, d] + 1, m - 1)
            else:
                bd_d = 1.0 - frac[:, d]
                id_d = k0[:, d]
            b = b * bd_d
            idx = idx + id_d * stride
            stride *= m
        np.add.at(bd, (np.arange(E), idx), b)
    return bd.astype(np.float32)


def spline_basis_padded(edge_attr, kernel_size, dim=3):
    """Padded (E, ceil(K,128)) bf16 basis ready for the edge kernel."""
    bd = spline_basis_dense(edge_attr, kernel_size, dim)
    K = bd.shape[1]
    kp = _ceil_to(K, LANE)
    out = np.zeros((bd.shape[0], kp), np.float32)
    out[:, :K] = bd
    return jnp.asarray(out, jnp.bfloat16)


def spline_conv_bn(h_pad, src, dst, bd, prep, mode, add2=None):
    """SplineConv (mean aggr, root weight + bias) with BN/ELU (+residual) fused."""
    N = h_pad.shape[0]
    E = int(src.shape[0])
    cin, cout, coutp = prep["cin"], prep["cout"], prep["coutp"]

    # edge messages: fused basis x weight contraction (Pallas kernel)
    # TODO(synk): the gather h[src] and the scatter-mean below are data-dependent;
    # they stay as XLA gather / segment ops (candidate for a sorted-edge,
    # scalar-prefetch fused kernel later).
    xj = jnp.take(h_pad[:, :cin], src, axis=0)            # (E, cin) bf16
    msgs = spline_messages(bd, xj, prep)                   # (E_pad, coutp) bf16

    m = msgs[:E, :cout].astype(jnp.float32)                # narrow scatter operand
    seg = jax.ops.segment_sum(m, dst, num_segments=N)
    cnt = jax.ops.segment_sum(jnp.ones((E,), jnp.float32), dst, num_segments=N)
    agg = seg / jnp.maximum(cnt, 1.0)[:, None]
    agg = _pad_last_to(agg, coutp)                         # lane-dense agg operand

    # fused root-linear + bias + aggregated messages + BN/ELU (+ residual add)
    return fused_linear(h_pad, prep["root"], prep["bias"], prep["scale"],
                        prep["shift"], agg=agg, add2=add2, mode=mode,
                        out_dtype=jnp.bfloat16)


# -------------------- graph pooling glue (host / numpy) ----------------------
# TODO(synk): pooling uses dynamic-shape unique/coalesce and is kept on host NumPy;
# this is the remaining host<->device sync point per layer.

def cartesian_edge_attr(pos, edge_index):
    """torch_geometric.transforms.Cartesian(cat=False): normalized pos[row]-pos[col]."""
    row, col = edge_index
    cart = pos[row] - pos[col]
    if cart.size:
        mx = np.abs(cart).max()
        mx = mx if mx > 0 else 1.0
        cart = cart / (2.0 * mx) + 0.5
    return cart.astype(np.float32)


def voxel_grid_cluster(pos, size):
    size = np.asarray(size, np.float64)
    if size.size == 1:
        size = np.full(pos.shape[1], float(size))
    start = pos.min(axis=0)
    cell = np.floor((pos - start) / size).astype(np.int64)
    _, cluster = np.unique(cell, axis=0, return_inverse=True)
    return cluster


def max_pool_graph(x, pos, edge_index, voxel_size):
    """voxel_grid + max_pool (scatter-max features, mean pos, coalesced edges)."""
    x = np.asarray(x, np.float32)
    pos = np.asarray(pos, np.float32)
    if voxel_size is None:
        # TODO(synk): reference pool_block1 uses voxel_size=[0] (degenerate);
        # interpreted as per-node clusters (identity pooling).
        cluster = np.arange(pos.shape[0], dtype=np.int64)
    else:
        cluster = voxel_grid_cluster(pos, voxel_size)
    n_c = int(cluster.max()) + 1
    new_x = np.full((n_c, x.shape[1]), -np.inf, np.float32)
    np.maximum.at(new_x, cluster, x)
    new_x[np.isneginf(new_x)] = 0.0
    new_pos = np.zeros((n_c, pos.shape[1]), np.float64)
    np.add.at(new_pos, cluster, pos)
    cnt = np.bincount(cluster, minlength=n_c).astype(np.float64)
    new_pos = (new_pos / np.maximum(cnt, 1.0)[:, None]).astype(np.float32)
    ei = cluster[np.asarray(edge_index)]
    ei = ei[:, ei[0] != ei[1]]                # remove self loops
    if ei.shape[1]:
        ei = np.unique(ei.T, axis=0).T        # coalesce
    # TODO(synk): with transform=None the reference would leave edge_attr=None
    # (which breaks the next SplineConv); Cartesian pseudo-coords are recomputed.
    ea = cartesian_edge_attr(new_pos, ei)
    return new_x, new_pos, ei.astype(np.int64), ea


def max_pool_x_fixed(x, pos, voxel_size, size):
    """MaxPoolingX: voxel_grid + max_pool_x(..., size=size); single graph (batch 0)."""
    x = np.asarray(x, np.float32)
    pos = np.asarray(pos, np.float32)
    cluster = voxel_grid_cluster(pos, voxel_size)
    buf = np.full((size, x.shape[1]), -np.inf, np.float32)
    mask = cluster < size  # TODO(synk): clusters beyond `size` slots dropped; empty slots -> 0
    np.maximum.at(buf, cluster[mask], x[mask])
    buf[np.isneginf(buf)] = 0.0
    return buf


# ------------------------- parameters & preparation ---------------------------

def init_params(key, n_classes, layer_sizes):
    keys = iter(jax.random.split(key, 64))

    def spline(cin, cout, ks):
        K = ks ** 3
        k1, k2, k3 = jax.random.split(next(keys), 3)
        return dict(
            weight=jax.random.normal(k1, (K, cin, cout), jnp.float32)
            * (1.0 / math.sqrt(cin * 8)),
            root=jax.random.normal(k2, (cin, cout), jnp.float32)
            * (1.0 / math.sqrt(cin)),
            bias=0.05 * jax.random.normal(k3, (cout,), jnp.float32),
        )

    def bn(c):
        k1, k2, k3, k4 = jax.random.split(next(keys), 4)
        gamma = 1.0 + 0.1 * jax.random.normal(k1, (c,), jnp.float32)
        beta = 0.1 * jax.random.normal(k2, (c,), jnp.float32)
        rm = 0.1 * jax.random.normal(k3, (c,), jnp.float32)
        rv = jax.random.uniform(k4, (c,), jnp.float32, 0.5, 1.5)
        scale = gamma / jnp.sqrt(rv + 1e-5)
        shift = beta - rm * scale
        return dict(scale=scale, shift=shift)

    params = dict(
        conv_block1=dict(conv=spline(1, layer_sizes[0], 5), bn=bn(layer_sizes[0])),
        res_blocks=[],
    )
    for layer in range(1, len(layer_sizes)):
        cin, cout = layer_sizes[layer - 1], layer_sizes[layer]
        params["res_blocks"].append(dict(
            c1=spline(cin, cout, 5), bn1=bn(cout),
            c2=spline(cout, cout, 5), bn2=bn(cout),
            cs=spline(cin, cout, 1), bns=bn(cout),
        ))
    k1, k2, k3, k4 = jax.random.split(next(keys), 4)
    d_in = 64 * layer_sizes[-1]
    params["fc1_w"] = jax.random.normal(k1, (d_in, 1024), jnp.float32) / math.sqrt(d_in)
    params["fc1_b"] = 0.05 * jax.random.normal(k2, (1024,), jnp.float32)
    params["fc2_w"] = jax.random.normal(k3, (1024, n_classes), jnp.float32) / math.sqrt(1024.0)
    params["fc2_b"] = 0.05 * jax.random.normal(k4, (n_classes,), jnp.float32)
    return params


def prepare_params(params, layer_sizes, n_classes):
    """One-time, hoisted weight preprocessing: padding, kernel layout, bf16 cast,
    BN fold.  Nothing here runs per forward pass."""

    def prep_conv(conv, bn, cin, cout, K):
        kp = _ceil_to(K, LANE)
        coutp = _ceil_to(cout, LANE)
        cinp = _ceil_to(cin, LANE)
        W = np.asarray(conv["weight"], np.float32)          # (K, cin, cout)
        if K == 1:
            w2 = np.zeros((cin, coutp), np.float32)
            w2[:, :cout] = W[0]
        else:
            w3 = np.zeros((cin, kp, coutp), np.float32)
            w3[:, :K, :cout] = np.transpose(W, (1, 0, 2))   # row c*kp+k = W[k,c,:]
            w2 = w3.reshape(cin * kp, coutp)
        root = np.zeros((cinp, coutp), np.float32)
        root[:cin, :cout] = np.asarray(conv["root"], np.float32)
        bias = np.zeros((1, coutp), np.float32)
        bias[0, :cout] = np.asarray(conv["bias"], np.float32)
        scale = np.zeros((1, coutp), np.float32)
        scale[0, :cout] = np.asarray(bn["scale"], np.float32)
        shift = np.zeros((1, coutp), np.float32)
        shift[0, :cout] = np.asarray(bn["shift"], np.float32)
        return dict(
            w2=jnp.asarray(w2, jnp.bfloat16),
            root=jnp.asarray(root, jnp.bfloat16),
            bias=jnp.asarray(bias, jnp.float32),
            scale=jnp.asarray(scale, jnp.float32),
            shift=jnp.asarray(shift, jnp.float32),
            cin=int(cin), cout=int(cout), coutp=int(coutp),
            cinp=int(cinp), K=int(K), kp=int(kp))

    prep = dict(res_blocks=[])
    prep["conv_block1"] = prep_conv(params["conv_block1"]["conv"],
                                    params["conv_block1"]["bn"],
                                    1, layer_sizes[0], 5 ** 3)
    for layer in range(1, len(layer_sizes)):
        rp = params["res_blocks"][layer - 1]
        cin, cout = layer_sizes[layer - 1], layer_sizes[layer]
        prep["res_blocks"].append(dict(
            c1=prep_conv(rp["c1"], rp["bn1"], cin, cout, 5 ** 3),
            c2=prep_conv(rp["c2"], rp["bn2"], cout, cout, 5 ** 3),
            cs=prep_conv(rp["cs"], rp["bns"], cin, cout, 1),
        ))

    d1 = int(params["fc1_w"].shape[1])
    prep["fc1"] = dict(
        w=jnp.asarray(np.asarray(params["fc1_w"], np.float32), jnp.bfloat16),
        b=jnp.asarray(np.asarray(params["fc1_b"], np.float32).reshape(1, d1)),
        s=jnp.ones((1, d1), jnp.float32), t=jnp.zeros((1, d1), jnp.float32))
    prep["fc2"] = dict(
        w=jnp.asarray(np.asarray(params["fc2_w"], np.float32), jnp.bfloat16),
        b=jnp.asarray(np.asarray(params["fc2_b"], np.float32).reshape(1, n_classes)),
        s=jnp.ones((1, n_classes), jnp.float32),
        t=jnp.zeros((1, n_classes), jnp.float32))
    return prep


# ------------------------------- full forward ---------------------------------

def resgnet_forward(prep, x, pos, edge_index, edge_attr, layer_sizes, voxel_sizes):
    n_layers = len(layer_sizes)

    # node features carried 128-lane padded bf16 (zeros past the real channels)
    h = jnp.asarray(x, jnp.float32)
    h = _pad_last_to(h, _ceil_to(h.shape[1], LANE)).astype(jnp.bfloat16)

    # conv_block1: bn(elu(SplineConv(x)))
    src = jnp.asarray(np.asarray(edge_index[0]), jnp.int32)
    dst = jnp.asarray(np.asarray(edge_index[1]), jnp.int32)
    bd5 = spline_basis_padded(edge_attr, 5)
    h = spline_conv_bn(h, src, dst, bd5, prep["conv_block1"], mode="elu_bn")

    # pool_block1 (voxel_size=[0] -> identity clustering, see TODO in max_pool_graph)
    c0 = layer_sizes[0]
    h_np, pos, edge_index, edge_attr = max_pool_graph(
        np.asarray(h[:, :c0].astype(jnp.float32)), pos, edge_index, None)
    h = _pad_last_to(jnp.asarray(h_np, jnp.float32), LANE).astype(jnp.bfloat16)

    xg = None
    for layer in range(1, n_layers):
        rp = prep["res_blocks"][layer - 1]
        cout = layer_sizes[layer]
        src = jnp.asarray(np.asarray(edge_index[0]), jnp.int32)
        dst = jnp.asarray(np.asarray(edge_index[1]), jnp.int32)
        bd5 = spline_basis_padded(edge_attr, 5)

        t = spline_conv_bn(h, src, dst, bd5, rp["c1"], mode="bn_elu")
        left = spline_conv_bn(t, src, dst, bd5, rp["c2"], mode="bn")
        # shortcut conv (kernel_size=1, no basis) + BN + residual add + ELU fused
        h = spline_conv_bn(h, src, dst, None, rp["cs"], mode="bn_add_elu", add2=left)

        if layer + 1 != n_layers:
            h_np, pos, edge_index, edge_attr = max_pool_graph(
                np.asarray(h[:, :cout].astype(jnp.float32)), pos, edge_index,
                voxel_sizes[layer])
            h = _pad_last_to(jnp.asarray(h_np, jnp.float32), LANE).astype(jnp.bfloat16)
        else:
            xg = max_pool_x_fixed(np.asarray(h[:, :cout].astype(jnp.float32)),
                                  pos, voxel_sizes[layer], size=64)

    xg = jnp.asarray(xg, jnp.float32).reshape(1, 64 * layer_sizes[-1])
    h = fused_linear(xg, prep["fc1"]["w"], prep["fc1"]["b"],
                     prep["fc1"]["s"], prep["fc1"]["t"],
                     mode="bn_elu", out_dtype=jnp.bfloat16)   # identity s/t -> elu
    # TODO(synk): F.dropout is identity under eval-mode (inference) semantics used here.
    return fused_linear(h, prep["fc2"]["w"], prep["fc2"]["b"],
                        prep["fc2"]["s"], prep["fc2"]["t"],
                        mode="log_softmax", out_dtype=jnp.float32)


# ------------------------------------ main ------------------------------------

if __name__ == "__main__":
    n_classes = 4
    layer_sizes = [8, 16, 16, 32]          # scaled-down constructor args
    voxel_sizes = [5.0, 10.0, 20.0, 30.0]

    key = jax.random.PRNGKey(0)
    kx, kp, ke, ke2, kparams = jax.random.split(key, 5)

    N, E = 128, 512
    x = jax.random.normal(kx, (N, 1), jnp.float32)                 # node features (N, 1)
    pos = jax.random.uniform(kp, (N, 3), jnp.float32, 0.0, 100.0)  # positions (N, 3)
    src = jax.random.randint(ke, (E,), 0, N)
    dst = (src + 1 + jax.random.randint(ke2, (E,), 0, N - 1)) % N  # no self loops
    edge_index = np.stack([np.asarray(src), np.asarray(dst)]).astype(np.int64)
    pos_np = np.asarray(pos)
    edge_attr = cartesian_edge_attr(pos_np, edge_index)            # dataset T.Cartesian(cat=False)

    params = init_params(kparams, n_classes, layer_sizes)
    prep = prepare_params(params, layer_sizes, n_classes)          # hoisted weight prep (once)

    out = resgnet_forward(prep, x, pos_np, edge_index, edge_attr,
                          layer_sizes, voxel_sizes)
    out = jax.block_until_ready(out)
    assert out.shape == (1, n_classes)
    assert bool(jnp.all(jnp.isfinite(out)))
    print("KERNEL_OK")
</pallas_src>

<mosaic_0001>
module attributes {stable_mosaic.version = 11 : i64} {
  func.func @_spline_msg_kernel(%arg0: i32, %arg1: memref<256x128xbf16, #tpu.memory_space<vmem>>, %arg2: memref<256x1xbf16, #tpu.memory_space<vmem>>, %arg3: memref<128x128xbf16, #tpu.memory_space<vmem>>, %arg4: memref<256x128xbf16, #tpu.memory_space<vmem>>, %arg5: memref<256x128xbf16, #tpu.memory_space<vmem>>) attributes {dimension_semantics = [#tpu.dimension_semantics<parallel>], iteration_bounds = array<i64: 2>, scalar_prefetch = 0 : i64, scratch_operands = 1 : i64, tpu.core_type = #tpu.core_type<tc>, window_params = [{transform_indices = @transform_0, window_bounds = array<i64: 256, 128>}, {transform_indices = @transform_1, window_bounds = array<i64: 256, 1>}, {pipeline_mode = #tpu.pipeline_mode<synchronous>, transform_indices = @transform_2, window_bounds = array<i64: 128, 128>}, {transform_indices = @transform_3, window_bounds = array<i64: 256, 128>}]} {
    %c0 = arith.constant 0 : index
    %c0_0 = arith.constant 0 : index
    %0 = vector.load %arg1[%c0, %c0_0] : memref<256x128xbf16, #tpu.memory_space<vmem>>, vector<256x128xbf16>
    %1 = arith.extf %0 : vector<256x128xbf16> to vector<256x128xf32>
    %c0_1 = arith.constant 0 : index
    %c0_2 = arith.constant 0 : index
    %2 = vector.load %arg2[%c0_1, %c0_2] : memref<256x1xbf16, #tpu.memory_space<vmem>>, vector<256x1xbf16>
    %3 = arith.extf %2 : vector<256x1xbf16> to vector<256x1xf32>
    %4 = vector.broadcast %3 : vector<256x1xf32> to vector<256x128xf32>
    %5 = arith.mulf %1, %4 : vector<256x128xf32>
    %6 = arith.truncf %5 : vector<256x128xf32> to vector<256x128xbf16>
    %c0_3 = arith.constant 0 : index
    %c0_4 = arith.constant 0 : index
    %7 = vector.load %arg5[%c0_3, %c0_4] : memref<256x128xbf16, #tpu.memory_space<vmem>>, vector<256x128xbf16>
    tpu.vector_store %arg5[%c0_3, %c0_4], %6 {strides = array<i32>} : memref<256x128xbf16, #tpu.memory_space<vmem>>, vector<256x128xbf16>,
    %c0_5 = arith.constant 0 : index
    %c0_6 = arith.constant 0 : index
    %8 = vector.load %arg5[%c0_5, %c0_6] : memref<256x128xbf16, #tpu.memory_space<vmem>>, vector<256x128xbf16>
    %c0_7 = arith.constant 0 : index
    %c0_8 = arith.constant 0 : index
    %9 = vector.load %arg3[%c0_7, %c0_8] : memref<128x128xbf16, #tpu.memory_space<vmem>>, vector<128x128xbf16>
    %cst = arith.constant dense<0.000000e+00> : vector<256x128xf32>
    %10 = tpu.matmul %8, %9, %cst {dimension_numbers = #tpu.dot_dimension_numbers<[1], [0], [0], [1], [0, 0, 1, 1], [], []>} : vector<256x128xbf16>, vector<128x128xbf16>, vector<256x128xf32> -> vector<256x128xf32>
    %11 = arith.truncf %10 : vector<256x128xf32> to vector<256x128xbf16>
    %c0_9 = arith.constant 0 : index
    %c0_10 = arith.constant 0 : index
    %12 = vector.load %arg4[%c0_9, %c0_10] : memref<256x128xbf16, #tpu.memory_space<vmem>>, vector<256x128xbf16>
    tpu.vector_store %arg4[%c0_9, %c0_10], %11 {strides = array<i32>} : memref<256x128xbf16, #tpu.memory_space<vmem>>, vector<256x128xbf16>,
    return
  }
  func.func @transform_0(%arg0: i32) -> (i32, i32) {
    %c0_i32 = arith.constant 0 : i32
    %c0_i32_0 = arith.constant 0 : i32
    return %arg0, %c0_i32 : i32, i32
  }
  func.func @transform_1(%arg0: i32) -> (i32, i32) {
    %c0_i32 = arith.constant 0 : i32
    %c0_i32_0 = arith.constant 0 : i32
    return %arg0, %c0_i32 : i32, i32
  }
  func.func @transform_2(%arg0: i32) -> (i32, i32) {
    %c0_i32 = arith.constant 0 : i32
    %c0_i32_0 = arith.constant 0 : i32
    %c0_i32_1 = arith.constant 0 : i32
    return %c0_i32, %c0_i32_0 : i32, i32
  }
  func.func @transform_3(%arg0: i32) -> (i32, i32) {
    %c0_i32 = arith.constant 0 : i32
    %c0_i32_0 = arith.constant 0 : i32
    return %arg0, %c0_i32 : i32, i32
  }
}

</mosaic_0001>

<llo_original>
// kernel: tpu_custom_call.1
$region0: #{tpu_custom_call.1}
  #allocation0 [shape = 'u32[]', space=smem, size = 0x4, offset = 0x4, fixed_abs, tag = 'smem constant byte address 0x4 - core index']
  #allocation1 [shape = 'u32[72,128]{1,0:T(1,128)}', space=vmem, size = 0x9000, scoped, tag = 'internal scratch']
  #allocation2 [shape = 'bf16[256,128]{1,0:T(8,128)(2,1)}', space=vmem, size = 0x10000, scoped, tag = 'scratch operand']
  %s0 = inlined_call_operand.vmem [shape: bf16[512,128], index: 0, kind: input, shape index: {}]
  %s1 = inlined_call_operand.vmem [shape: bf16[512,1], index: 1, kind: input, shape index: {}]
  %s2 = inlined_call_operand.hbm [shape: bf16[128,128], index: 2, kind: input, shape index: {}]
  %s3 = inlined_call_operand.hbm [shape: bf16[512,128], index: 3, kind: output, shape index: {}]
  %s4 = sld [smem:[#allocation0]]
  $region49: #{tpu_custom_call.1} parent=0
    _
  %s6 = ssub.s32 1, %s4
  %s7 = scalar_select 0, %s6, %s4
  $region1: #{tpu_custom_call.1} parent=0
    #allocation3 [shape = 'u8[32768]{0}', space=vmem, size = 0x8000, scoped, tag = 'input window, operand 2, single buffered']
    #allocation4 [shape = 's32[2]{0}', space=sflag, size = 0x8, scoped, tag = 'scoped memory for tpu_custom_call.1']
    #allocation5 [shape = 's32[2]{0}', space=sflag, size = 0x8, scoped, tag = 'scoped memory for tpu_custom_call.1']
    #allocation6 [shape = 'u8[131072]{0}', space=vmem, size = 0x20000, scoped, tag = 'output window, operand 0']
    %8 = vsyncpa [#allocation4], 0
    %9 = vsyncpa [#allocation5], 0
    %s10 = scalar_lea.sflag [#allocation5], 1
    %11 = vsyncpa %s10, 0
    loop: start=0, step=1, limit=4
    $region2: #{tpu_custom_call.1} parent=1 // loop_pre_header
      _
    $region3: #{tpu_custom_call.1} parent=1 // loop_header
      %s13 = sphi 0, %s17
      %p14 = scmp.ge.s32.totalorder %s13, 4
      %s23 = sphi 0, %s25
      %s26 = sphi 0, %s23
      %s27 = sphi 0, %s26
      %s43 = sphi 0, %s27
      %s49 = sphi 0, %s51
      %s52 = sphi 0, %s49
      %s53 = sphi 0, %s52
      %s69 = sphi 0, %s53
      %s73 = sphi 0, %s73
      %s75 = sphi 0, %s73
      %s76 = sphi 0, %s75
      %s90 = sphi 0, %s76
      %s96 = sphi 0, %s98
      %s99 = sphi 0, %s96
      %s100 = sphi 0, %s99
      %s116 = sphi 0, %s100
    $region4: #{tpu_custom_call.1} parent=1 // loop_header_branch
      %16 = sbr.rel (%p14) target = $region8
    $region5: #{tpu_custom_call.1} parent=1 // loop_body
      %s18 = ssub.s32 %s13, 1
      %s19 = ssub.s32 %s13, 2
      %s20 = sadd.s32 %s13, 1
      %s21 = ssub.s32 %s13, %s20
      %p22 = scmp.eq.s32.totalorder %s21, 0
      %s24 = sadd.s32 %s23, 1
      %s25 = scalar_select %p22, %s23, %s24
      %p28 = pneg %p22
      %p29 = scmp.eq.s32.totalorder %s13, 1
      %p30 = por %p28, %p29
      %p31 = scmp.ne.s32.totalorder %s23, %s26
      %p32 = scmp.eq.s32.totalorder %s13, 0
      %p33 = por %p31, %p32
      %p34 = scmp.ne.s32.totalorder %s23, %s26
      %p35 = scmp.eq.s32.totalorder %s18, 1
      %p36 = por %p34, %p35
      %p37 = scmp.ne.s32.totalorder %s26, %s27
      %p38 = scmp.eq.s32.totalorder %s18, 0
      %p39 = por %p37, %p38
      %p40 = scmp.ne.s32.totalorder %s26, %s27
      %p41 = scmp.eq.s32.totalorder %s19, 1
      %p42 = por %p40, %p41
      %p44 = scmp.ne.s32.totalorder %s27, %s43
      %p45 = scmp.eq.s32.totalorder %s19, 0
      %p46 = por %p44, %p45
      %s47 = ssub.s32 %s13, %s20
      %p48 = scmp.eq.s32.totalorder %s47, 0
      %s50 = sadd.s32 %s49, 1
      %s51 = scalar_select %p48, %s49, %s50
      %p54 = pneg %p48
      %p55 = scmp.eq.s32.totalorder %s13, 1
      %p56 = por %p54, %p55
      %p57 = scmp.ne.s32.totalorder %s49, %s52
      %p58 = scmp.eq.s32.totalorder %s13, 0
      %p59 = por %p57, %p58
      %p60 = scmp.ne.s32.totalorder %s49, %s52
      %p61 = scmp.eq.s32.totalorder %s18, 1
      %p62 = por %p60, %p61
      %p63 = scmp.ne.s32.totalorder %s52, %s53
      %p64 = scmp.eq.s32.totalorder %s18, 0
      %p65 = por %p63, %p64
      %p66 = scmp.ne.s32.totalorder %s52, %s53
      %p67 = scmp.eq.s32.totalorder %s19, 1
      %p68 = por %p66, %p67
      %p70 = scmp.ne.s32.totalorder %s53, %s69
      %p71 = scmp.eq.s32.totalorder %s19, 0
      %p72 = por %p70, %p71
      %s74 = sadd.s32 %s73, 1
      %p77 = scmp.eq.s32.totalorder %s13, 1
      %p78 = scmp.ne.s32.totalorder %s73, %s75
      %p79 = scmp.eq.s32.totalorder %s13, 0
      %p80 = por %p78, %p79
      %p81 = scmp.ne.s32.totalorder %s73, %s75
      %p82 = scmp.eq.s32.totalorder %s18, 1
      %p83 = por %p81, %p82
      %p84 = scmp.ne.s32.totalorder %s75, %s76
      %p85 = scmp.eq.s32.totalorder %s18, 0
      %p86 = por %p84, %p85
      %p87 = scmp.ne.s32.totalorder %s75, %s76
      %p88 = scmp.eq.s32.totalorder %s19, 1
      %p89 = por %p87, %p88
      %p91 = scmp.ne.s32.totalorder %s76, %s90
      %p92 = scmp.eq.s32.totalorder %s19, 0
      %p93 = por %p91, %p92
      %s94 = ssub.s32 %s13, %s20
      %p95 = scmp.eq.s32.totalorder %s94, 0
      %s97 = sadd.s32 %s96, 1
      %s98 = scalar_select %p95, %s96, %s97
      %p101 = pneg %p95
      %p102 = scmp.eq.s32.totalorder %s13, 1
      %p103 = por %p101, %p102
      %p104 = scmp.ne.s32.totalorder %s96, %s99
      %p105 = scmp.eq.s32.totalorder %s13, 0
      %p106 = por %p104, %p105
      %p107 = scmp.ne.s32.totalorder %s96, %s99
      %p108 = scmp.eq.s32.totalorder %s18, 1
      %p109 = por %p107, %p108
      %p110 = scmp.ne.s32.totalorder %s99, %s100
      %p111 = scmp.eq.s32.totalorder %s18, 0
      %p112 = por %p110, %p111
      %p113 = scmp.ne.s32.totalorder %s99, %s100
      %p114 = scmp.eq.s32.totalorder %s19, 1
      %p115 = por %p113, %p114
      %p117 = scmp.ne.s32.totalorder %s100, %s116
      %p118 = scmp.eq.s32.totalorder %s19, 0
      %p119 = por %p117, %p118
      %p120 = scmp.le.s32.totalorder 1, %s13
      %p121 = scmp.lt.s32.totalorder %s13, 3
      %p122 = pnand %p120, %p121
      %p123 = pneg %p122
      // Predicated region
      $region9: #{tpu_custom_call.1} parent=5 // pred_check
        _
      $region10: #{tpu_custom_call.1} parent=5 // pred_check_branch
        %125 = sbr.rel (%p122) target = $region12
      $region11: #{tpu_custom_call.1} parent=5 // pred_region
        %s126 = ssub.s32 %s13, 1
        // Predicated region
        $region13: #{tpu_custom_call.1} parent=11 // pred_check
          %p127 = pneg %p86
        $region14: #{tpu_custom_call.1} parent=11 // pred_check_branch
          %129 = sbr.rel (%p127) target = $region16
        $region15: #{tpu_custom_call.1} parent=11 // pred_region
          %131 = vsyncadd [#allocation4], 0
          %s132 = sshll.u32 %s2, 4
          %s133 = int_to_ptr.hbm [resolvable:$true] %s132
          %s134 = sshll.u32 [#allocation3], 4
          %s135 = int_to_ptr.vmem [resolvable:$true] %s134
          %140 = dma.hbm_to_vmem [thread:$0]  %s133, 1024, %s135, [#allocation4], 64, 64, 4
        $region16: #{tpu_custom_call.1} parent=11 // pred_fallthru
          _
      $region12: #{tpu_custom_call.1} parent=5 // pred_fallthru
        _
      %p141 = scmp.lt.s32.totalorder %s13, 2
      // Predicated region
      $region17: #{tpu_custom_call.1} parent=5 // pred_check
        %p142 = pneg %p141
      $region18: #{tpu_custom_call.1} parent=5 // pred_check_branch
        %144 = sbr.rel (%p142) target = $region20
      $region19: #{tpu_custom_call.1} parent=5 // pred_region
        // Predicated region
        $region21: #{tpu_custom_call.1} parent=19 // pred_check
          %p145 = pneg %p33
        $region22: #{tpu_custom_call.1} parent=19 // pred_check_branch
          %147 = sbr.rel (%p145) target = $region24
        $region23: #{tpu_custom_call.1} parent=19 // pred_region
          %s148 = smul.u32 32, %s13
          %p149 = scmp.lt.s32.totalorder %s148, 63
          %s150 = scalar_select %p149, %s148, 63
          %s151 = smul.addr %s150, 4
          %s152 = scalar_lea.vmem %s0, %s151
          %s153 = smul.u32 32, %s13
        $region24: #{tpu_custom_call.1} parent=19 // pred_fallthru
          _
        // Predicated region
        $region25: #{tpu_custom_call.1} parent=19 // pred_check
          %p154 = pneg %p59
        $region26: #{tpu_custom_call.1} parent=19 // pred_check_branch
          %156 = sbr.rel (%p154) target = $region28
        $region27: #{tpu_custom_call.1} parent=19 // pred_region
          %s157 = smul.u32 32, %s13
          %p158 = scmp.lt.s32.totalorder %s157, 63
          %s159 = scalar_select %p158, %s157, 63
          %s160 = smul.addr %s159, 4
          %s161 = scalar_lea.vmem %s1, %s160
          %s162 = smul.u32 32, %s13
        $region28: #{tpu_custom_call.1} parent=19 // pred_fallthru
          _
      $region20: #{tpu_custom_call.1} parent=5 // pred_fallthru
        _
      %p163 = scmp.le.s32.totalorder 1, %s13
      %p164 = scmp.lt.s32.totalorder %s13, 3
      %p165 = pnand %p163, %p164
      %p166 = pneg %p165
      // Predicated region
      $region29: #{tpu_custom_call.1} parent=5 // pred_check
        _
      $region30: #{tpu_custom_call.1} parent=5 // pred_check_branch
        %168 = sbr.rel (%p165) target = $region32
      $region31: #{tpu_custom_call.1} parent=5 // pred_region
        %s169 = ssub.s32 %s13, 1
        // Predicated region
        $region33: #{tpu_custom_call.1} parent=31 // pred_check
          %p170 = pneg %p86
        $region34: #{tpu_custom_call.1} parent=31 // pred_check_branch
          %172 = sbr.rel (%p170) target = $region36
        $region35: #{tpu_custom_call.1} parent=31 // pred_region
          %174 = dma.done [#allocation4], 1024
        $region36: #{tpu_custom_call.1} parent=31 // pred_fallthru
          _
        %s175 = smul.u32 32, %s18
        %p176 = scmp.lt.s32.totalorder %s175, 63
        %s177 = scalar_select %p176, %s175, 63
        %s178 = smul.addr %s177, 4
        %s179 = scalar_lea.vmem %s0, %s178
        %p180 = pneg %p39
        %p181 = pneg %p36
        %s182 = smul.u32 32, %s18
        %p183 = scmp.lt.s32.totalorder %s182, 63
        %s184 = scalar_select %p183, %s182, 63
        %s185 = smul.addr %s184, 4
        %s186 = scalar_lea.vmem %s1, %s185
        %p187 = pneg %p65
        %p188 = pneg %p62
        %p189 = pneg %p86
        %p190 = pneg %p83
        %p191 = pneg %p112
        %p192 = pneg %p109
        %s193 = sand.u32 %s99, 1
        %s194 = scalar_lea.sflag [#allocation5], %s193
        %s195 = sand.u32 %s99, 1
        %s196 = smul.addr %s195, 128
        %s197 = scalar_lea.vmem [#allocation6], %s196
        %s198 = smul.u32 32, %s18
        %p199 = scmp.lt.s32.totalorder %s198, 63
        %s200 = scalar_select %p199, %s198, 63
        %s201 = smul.addr %s200, 4
        %s202 = scalar_lea.vmem %s0, %s201
        %s203 = smul.u32 32, %s18
        %s204 = smul.u32 32, %s18
        %p205 = scmp.lt.s32.totalorder %s204, 63
        %s206 = scalar_select %p205, %s204, 63
        %s207 = smul.addr %s206, 4
        %s208 = scalar_lea.vmem %s1, %s207
        %s209 = smul.u32 32, %s18
        %s210 = smul.u32 32, %s18
        %v211 = vld [vmem:[%s202] sm:$0xf]
        %v212 = vld [vmem:[%s202 + $0x4] sm:$0xf]
        %v213 = vld [vmem:[%s202 + $0x8] sm:$0xf]
        %v214 = vld [vmem:[%s202 + $0xc] sm:$0xf]
        %v215 = vld [vmem:[%s202 + $0x10] sm:$0xf]
        %v216 = vld [vmem:[%s202 + $0x14] sm:$0xf]
        %v217 = vld [vmem:[%s202 + $0x18] sm:$0xf]
        %v218 = vld [vmem:[%s202 + $0x1c] sm:$0xf]
        %v219 = vld [vmem:[%s202 + $0x20] sm:$0xf]
        %v220 = vld [vmem:[%s202 + $0x24] sm:$0xf]
        %v221 = vld [vmem:[%s202 + $0x28] sm:$0xf]
        %v222 = vld [vmem:[%s202 + $0x2c] sm:$0xf]
        %v223 = vld [vmem:[%s202 + $0x30] sm:$0xf]
        %v224 = vld [vmem:[%s202 + $0x34] sm:$0xf]
        %v225 = vld [vmem:[%s202 + $0x38] sm:$0xf]
        %v226 = vld [vmem:[%s202 + $0x3c] sm:$0xf]
        %v227 = vld [vmem:[%s202 + $0x40] sm:$0xf]
        %v228 = vld [vmem:[%s202 + $0x44] sm:$0xf]
        %v229 = vld [vmem:[%s202 + $0x48] sm:$0xf]
        %v230 = vld [vmem:[%s202 + $0x4c] sm:$0xf]
        %v231 = vld [vmem:[%s202 + $0x50] sm:$0xf]
        %v232 = vld [vmem:[%s202 + $0x54] sm:$0xf]
        %v233 = vld [vmem:[%s202 + $0x58] sm:$0xf]
        %v234 = vld [vmem:[%s202 + $0x5c] sm:$0xf]
        %v235 = vld [vmem:[%s202 + $0x60] sm:$0xf]
        %v236 = vld [vmem:[%s202 + $0x64] sm:$0xf]
        %v237 = vld [vmem:[%s202 + $0x68] sm:$0xf]
        %v238 = vld [vmem:[%s202 + $0x6c] sm:$0xf]
        %v239 = vld [vmem:[%s202 + $0x70] sm:$0xf]
        %v240 = vld [vmem:[%s202 + $0x74] sm:$0xf]
        %v241 = vld [vmem:[%s202 + $0x78] sm:$0xf]
        %v242 = vld [vmem:[%s202 + $0x7c] sm:$0xf]
        %v243 = vunpack.c.l.bf16 %v211
        %v244 = vunpack.c.l.bf16 %v212
        %v245 = vunpack.c.l.bf16 %v213
        %v246 = vunpack.c.l.bf16 %v214
        %v247 = vunpack.c.l.bf16 %v215
        %v248 = vunpack.c.l.bf16 %v216
        %v249 = vunpack.c.l.bf16 %v217
        %v250 = vunpack.c.l.bf16 %v218
        %v251 = vunpack.c.l.bf16 %v219
        %v252 = vunpack.c.l.bf16 %v220
        %v253 = vunpack.c.l.bf16 %v221
        %v254 = vunpack.c.l.bf16 %v222
        %v255 = vunpack.c.l.bf16 %v223
        %v256 = vunpack.c.l.bf16 %v224
        %v257 = vunpack.c.l.bf16 %v225
        %v258 = vunpack.c.l.bf16 %v226
        %v259 = vunpack.c.l.bf16 %v227
        %v260 = vunpack.c.l.bf16 %v228
        %v261 = vunpack.c.l.bf16 %v229
        %v262 = vunpack.c.l.bf16 %v230
        %v263 = vunpack.c.l.bf16 %v231
        %v264 = vunpack.c.l.bf16 %v232
        %v265 = vunpack.c.l.bf16 %v233
        %v266 = vunpack.c.l.bf16 %v234
        %v267 = vunpack.c.l.bf16 %v235
        %v268 = vunpack.c.l.bf16 %v236
        %v269 = vunpack.c.l.bf16 %v237
        %v270 = vunpack.c.l.bf16 %v238
        %v271 = vunpack.c.l.bf16 %v239
        %v272 = vunpack.c.l.bf16 %v240
        %v273 = vunpack.c.l.bf16 %v241
        %v274 = vunpack.c.l.bf16 %v242
        %v275 = vld [vmem:[%s208] sm:$0xf]
        %v276 = vld [vmem:[%s208 + $0x4] sm:$0xf]
        %v277 = vld [vmem:[%s208 + $0x8] sm:$0xf]
        %v278 = vld [vmem:[%s208 + $0xc] sm:$0xf]
        %v279 = vld [vmem:[%s208 + $0x10] sm:$0xf]
        %v280 = vld [vmem:[%s208 + $0x14] sm:$0xf]
        %v281 = vld [vmem:[%s208 + $0x18] sm:$0xf]
        %v282 = vld [vmem:[%s208 + $0x1c] sm:$0xf]
        %v283 = vld [vmem:[%s208 + $0x20] sm:$0xf]
        %v284 = vld [vmem:[%s208 + $0x24] sm:$0xf]
        %v285 = vld [vmem:[%s208 + $0x28] sm:$0xf]
        %v286 = vld [vmem:[%s208 + $0x2c] sm:$0xf]
        %v287 = vld [vmem:[%s208 + $0x30] sm:$0xf]
        %v288 = vld [vmem:[%s208 + $0x34] sm:$0xf]
        %v289 = vld [vmem:[%s208 + $0x38] sm:$0xf]
        %v290 = vld [vmem:[%s208 + $0x3c] sm:$0xf]
        %v291 = vld [vmem:[%s208 + $0x40] sm:$0xf]
        %v292 = vld [vmem:[%s208 + $0x44] sm:$0xf]
        %v293 = vld [vmem:[%s208 + $0x48] sm:$0xf]
        %v294 = vld [vmem:[%s208 + $0x4c] sm:$0xf]
        %v295 = vld [vmem:[%s208 + $0x50] sm:$0xf]
        %v296 = vld [vmem:[%s208 + $0x54] sm:$0xf]
        %v297 = vld [vmem:[%s208 + $0x58] sm:$0xf]
        %v298 = vld [vmem:[%s208 + $0x5c] sm:$0xf]
        %v299 = vld [vmem:[%s208 + $0x60] sm:$0xf]
        %v300 = vld [vmem:[%s208 + $0x64] sm:$0xf]
        %v301 = vld [vmem:[%s208 + $0x68] sm:$0xf]
        %v302 = vld [vmem:[%s208 + $0x6c] sm:$0xf]
        %v303 = vld [vmem:[%s208 + $0x70] sm:$0xf]
        %v304 = vld [vmem:[%s208 + $0x74] sm:$0xf]
        %v305 = vld [vmem:[%s208 + $0x78] sm:$0xf]
        %v306 = vld [vmem:[%s208 + $0x7c] sm:$0xf]
        %v307 = vunpack.c.l.bf16 %v275
        %v308 = vunpack.c.l.bf16 %v276
        %v309 = vunpack.c.l.bf16 %v277
        %v310 = vunpack.c.l.bf16 %v278
        %v311 = vunpack.c.l.bf16 %v279
        %v312 = vunpack.c.l.bf16 %v280
        %v313 = vunpack.c.l.bf16 %v281
        %v314 = vunpack.c.l.bf16 %v282
        %v315 = vunpack.c.l.bf16 %v283
        %v316 = vunpack.c.l.bf16 %v284
        %v317 = vunpack.c.l.bf16 %v285
        %v318 = vunpack.c.l.bf16 %v286
        %v319 = vunpack.c.l.bf16 %v287
        %v320 = vunpack.c.l.bf16 %v288
        %v321 = vunpack.c.l.bf16 %v289
        %v322 = vunpack.c.l.bf16 %v290
        %v323 = vunpack.c.l.bf16 %v291
        %v324 = vunpack.c.l.bf16 %v292
        %v325 = vunpack.c.l.bf16 %v293
        %v326 = vunpack.c.l.bf16 %v294
        %v327 = vunpack.c.l.bf16 %v295
        %v328 = vunpack.c.l.bf16 %v296
        %v329 = vunpack.c.l.bf16 %v297
        %v330 = vunpack.c.l.bf16 %v298
        %v331 = vunpack.c.l.bf16 %v299
        %v332 = vunpack.c.l.bf16 %v300
        %v333 = vunpack.c.l.bf16 %v301
        %v334 = vunpack.c.l.bf16 %v302
        %v335 = vunpack.c.l.bf16 %v303
        %v336 = vunpack.c.l.bf16 %v304
        %v337 = vunpack.c.l.bf16 %v305
        %v338 = vunpack.c.l.bf16 %v306
        %340 = vset.pattern.permute.xlu0 0
        %341 = vperm.xlu0 %340, %v307
        %v342 = vpop.permute.xlu0 %341
        %345 = vset.pattern.permute.xlu0 0
        %346 = vperm.xlu0 %345, %v308
        %v347 = vpop.permute.xlu0 %346
        %350 = vset.pattern.permute.xlu0 0
        %351 = vperm.xlu0 %350, %v309
        %v352 = vpop.permute.xlu0 %351
        %355 = vset.pattern.permute.xlu0 0
        %356 = vperm.xlu0 %355, %v310
        %v357 = vpop.permute.xlu0 %356
        %360 = vset.pattern.permute.xlu0 0
        %361 = vperm.xlu0 %360, %v311
        %v362 = vpop.permute.xlu0 %361
        %365 = vset.pattern.permute.xlu0 0
        %366 = vperm.xlu0 %365, %v312
        %v367 = vpop.permute.xlu0 %366
        %370 = vset.pattern.permute.xlu0 0
        %371 = vperm.xlu0 %370, %v313
        %v372 = vpop.permute.xlu0 %371
        %375 = vset.pattern.permute.xlu0 0
        %376 = vperm.xlu0 %375, %v314
        %v377 = vpop.permute.xlu0 %376
        %380 = vset.pattern.permute.xlu0 0
        %381 = vperm.xlu0 %380, %v315
        %v382 = vpop.permute.xlu0 %381
        %385 = vset.pattern.permute.xlu0 0
        %386 = vperm.xlu0 %385, %v316
        %v387 = vpop.permute.xlu0 %386
        %390 = vset.pattern.permute.xlu0 0
        %391 = vperm.xlu0 %390, %v317
        %v392 = vpop.permute.xlu0 %391
        %395 = vset.pattern.permute.xlu0 0
        %396 = vperm.xlu0 %395, %v318
        %v397 = vpop.permute.xlu0 %396
        %400 = vset.pattern.permute.xlu0 0
        %401 = vperm.xlu0 %400, %v319
        %v402 = vpop.permute.xlu0 %401
        %405 = vset.pattern.permute.xlu0 0
        %406 = vperm.xlu0 %405, %v320
        %v407 = vpop.permute.xlu0 %406
        %410 = vset.pattern.permute.xlu0 0
        %411 = vperm.xlu0 %410, %v321
        %v412 = vpop.permute.xlu0 %411
        %415 = vset.pattern.permute.xlu0 0
        %416 = vperm.xlu0 %415, %v322
        %v417 = vpop.permute.xlu0 %416
        %420 = vset.pattern.permute.xlu0 0
        %421 = vperm.xlu0 %420, %v323
        %v422 = vpop.permute.xlu0 %421
        %425 = vset.pattern.permute.xlu0 0
        %426 = vperm.xlu0 %425, %v324
        %v427 = vpop.permute.xlu0 %426
        %430 = vset.pattern.permute.xlu0 0
        %431 = vperm.xlu0 %430, %v325
        %v432 = vpop.permute.xlu0 %431
        %435 = vset.pattern.permute.xlu0 0
        %436 = vperm.xlu0 %435, %v326
        %v437 = vpop.permute.xlu0 %436
        %440 = vset.pattern.permute.xlu0 0
        %441 = vperm.xlu0 %440, %v327
        %v442 = vpop.permute.xlu0 %441
        %445 = vset.pattern.permute.xlu0 0
        %446 = vperm.xlu0 %445, %v328
        %v447 = vpop.permute.xlu0 %446
        %450 = vset.pattern.permute.xlu0 0
        %451 = vperm.xlu0 %450, %v329
        %v452 = vpop.permute.xlu0 %451
        %455 = vset.pattern.permute.xlu0 0
        %456 = vperm.xlu0 %455, %v330
        %v457 = vpop.permute.xlu0 %456
        %460 = vset.pattern.permute.xlu0 0
        %461 = vperm.xlu0 %460, %v331
        %v462 = vpop.permute.xlu0 %461
        %465 = vset.pattern.permute.xlu0 0
        %466 = vperm.xlu0 %465, %v332
        %v467 = vpop.permute.xlu0 %466
        %470 = vset.pattern.permute.xlu0 0
        %471 = vperm.xlu0 %470, %v333
        %v472 = vpop.permute.xlu0 %471
        %475 = vset.pattern.permute.xlu0 0
        %476 = vperm.xlu0 %475, %v334
        %v477 = vpop.permute.xlu0 %476
        %480 = vset.pattern.permute.xlu0 0
        %481 = vperm.xlu0 %480, %v335
        %v482 = vpop.permute.xlu0 %481
        %485 = vset.pattern.permute.xlu0 0
        %486 = vperm.xlu0 %485, %v336
        %v487 = vpop.permute.xlu0 %486
        %490 = vset.pattern.permute.xlu0 0
        %491 = vperm.xlu0 %490, %v337
        %v492 = vpop.permute.xlu0 %491
        %495 = vset.pattern.permute.xlu0 0
        %496 = vperm.xlu0 %495, %v338
        %v497 = vpop.permute.xlu0 %496
        %v499 = vmul.f32 %v243, %v342
        %v500 = vmul.f32 %v244, %v347
        %v501 = vmul.f32 %v245, %v352
        %v502 = vmul.f32 %v246, %v357
        %v503 = vmul.f32 %v247, %v362
        %v504 = vmul.f32 %v248, %v367
        %v505 = vmul.f32 %v249, %v372
        %v506 = vmul.f32 %v250, %v377
        %v507 = vmul.f32 %v251, %v382
        %v508 = vmul.f32 %v252, %v387
        %v509 = vmul.f32 %v253, %v392
        %v510 = vmul.f32 %v254, %v397
        %v511 = vmul.f32 %v255, %v402
        %v512 = vmul.f32 %v256, %v407
        %v513 = vmul.f32 %v257, %v412
        %v514 = vmul.f32 %v258, %v417
        %v515 = vmul.f32 %v259, %v422
        %v516 = vmul.f32 %v260, %v427
        %v517 = vmul.f32 %v261, %v432
        %v518 = vmul.f32 %v262, %v437
        %v519 = vmul.f32 %v263, %v442
        %v520 = vmul.f32 %v264, %v447
        %v521 = vmul.f32 %v265, %v452
        %v522 = vmul.f32 %v266, %v457
        %v523 = vmul.f32 %v267, %v462
        %v524 = vmul.f32 %v268, %v467
        %v525 = vmul.f32 %v269, %v472
        %v526 = vmul.f32 %v270, %v477
        %v527 = vmul.f32 %v271, %v482
        %v528 = vmul.f32 %v272, %v487
        %v529 = vmul.f32 %v273, %v492
        %v530 = vmul.f32 %v274, %v497
        %v531 = vpack.c.bf16 %v499, %v499
        %v532 = vpack.c.bf16 %v500, %v500
        %v533 = vpack.c.bf16 %v501, %v501
        %v534 = vpack.c.bf16 %v502, %v502
        %v535 = vpack.c.bf16 %v503, %v503
        %v536 = vpack.c.bf16 %v504, %v504
        %v537 = vpack.c.bf16 %v505, %v505
        %v538 = vpack.c.bf16 %v506, %v506
        %v539 = vpack.c.bf16 %v507, %v507
        %v540 = vpack.c.bf16 %v508, %v508
        %v541 = vpack.c.bf16 %v509, %v509
        %v542 = vpack.c.bf16 %v510, %v510
        %v543 = vpack.c.bf16 %v511, %v511
        %v544 = vpack.c.bf16 %v512, %v512
        %v545 = vpack.c.bf16 %v513, %v513
        %v546 = vpack.c.bf16 %v514, %v514
        %v547 = vpack.c.bf16 %v515, %v515
        %v548 = vpack.c.bf16 %v516, %v516
        %v549 = vpack.c.bf16 %v517, %v517
        %v550 = vpack.c.bf16 %v518, %v518
        %v551 = vpack.c.bf16 %v519, %v519
        %v552 = vpack.c.bf16 %v520, %v520
        %v553 = vpack.c.bf16 %v521, %v521
        %v554 = vpack.c.bf16 %v522, %v522
        %v555 = vpack.c.bf16 %v523, %v523
        %v556 = vpack.c.bf16 %v524, %v524
        %v557 = vpack.c.bf16 %v525, %v525
        %v558 = vpack.c.bf16 %v526, %v526
        %v559 = vpack.c.bf16 %v527, %v527
        %v560 = vpack.c.bf16 %v528, %v528
        %v561 = vpack.c.bf16 %v529, %v529
        %v562 = vpack.c.bf16 %v530, %v530
        %563 = vst [vmem:[#allocation2] sm:$0xf] %v531
        %564 = vst [vmem:[#allocation2 + $0x4] sm:$0xf] %v532
        %565 = vst [vmem:[#allocation2 + $0x8] sm:$0xf] %v533
        %566 = vst [vmem:[#allocation2 + $0xc] sm:$0xf] %v534
        %567 = vst [vmem:[#allocation2 + $0x10] sm:$0xf] %v535
        %568 = vst [vmem:[#allocation2 + $0x14] sm:$0xf] %v536
        %569 = vst [vmem:[#allocation2 + $0x18] sm:$0xf] %v537
        %570 = vst [vmem:[#allocation2 + $0x1c] sm:$0xf] %v538
        %571 = vst [vmem:[#allocation2 + $0x20] sm:$0xf] %v539
        %572 = vst [vmem:[#allocation2 + $0x24] sm:$0xf] %v540
        %573 = vst [vmem:[#allocation2 + $0x28] sm:$0xf] %v541
        %574 = vst [vmem:[#allocation2 + $0x2c] sm:$0xf] %v542
        %575 = vst [vmem:[#allocation2 + $0x30] sm:$0xf] %v543
        %576 = vst [vmem:[#allocation2 + $0x34] sm:$0xf] %v544
        %577 = vst [vmem:[#allocation2 + $0x38] sm:$0xf] %v545
        %578 = vst [vmem:[#allocation2 + $0x3c] sm:$0xf] %v546
        %579 = vst [vmem:[#allocation2 + $0x40] sm:$0xf] %v547
        %580 = vst [vmem:[#allocation2 + $0x44] sm:$0xf] %v548
        %581 = vst [vmem:[#allocation2 + $0x48] sm:$0xf] %v549
        %582 = vst [vmem:[#allocation2 + $0x4c] sm:$0xf] %v550
        %583 = vst [vmem:[#allocation2 + $0x50] sm:$0xf] %v551
        %584 = vst [vmem:[#allocation2 + $0x54] sm:$0xf] %v552
        %585 = vst [vmem:[#allocation2 + $0x58] sm:$0xf] %v553
        %586 = vst [vmem:[#allocation2 + $0x5c] sm:$0xf] %v554
        %587 = vst [vmem:[#allocation2 + $0x60] sm:$0xf] %v555
        %588 = vst [vmem:[#allocation2 + $0x64] sm:$0xf] %v556
        %589 = vst [vmem:[#allocation2 + $0x68] sm:$0xf] %v557
        %590 = vst [vmem:[#allocation2 + $0x6c] sm:$0xf] %v558
        %591 = vst [vmem:[#allocation2 + $0x70] sm:$0xf] %v559
        %592 = vst [vmem:[#allocation2 + $0x74] sm:$0xf] %v560
        %593 = vst [vmem:[#allocation2 + $0x78] sm:$0xf] %v561
        %594 = vst [vmem:[#allocation2 + $0x7c] sm:$0xf] %v562
        %v595 = vld [vmem:[#allocation2] sm:$0xf]
        %v596 = vld [vmem:[#allocation2 + $0x4] sm:$0xf]
        %v597 = vld [vmem:[#allocation2 + $0x8] sm:$0xf]
        %v598 = vld [vmem:[#allocation2 + $0xc] sm:$0xf]
        %v599 = vld [vmem:[#allocation2 + $0x10] sm:$0xf]
        %v600 = vld [vmem:[#allocation2 + $0x14] sm:$0xf]
        %v601 = vld [vmem:[#allocation2 + $0x18] sm:$0xf]
        %v602 = vld [vmem:[#allocation2 + $0x1c] sm:$0xf]
        %v603 = vld [vmem:[#allocation2 + $0x20] sm:$0xf]
        %v604 = vld [vmem:[#allocation2 + $0x24] sm:$0xf]
        %v605 = vld [vmem:[#allocation2 + $0x28] sm:$0xf]
        %v606 = vld [vmem:[#allocation2 + $0x2c] sm:$0xf]
        %v607 = vld [vmem:[#allocation2 + $0x30] sm:$0xf]
        %v608 = vld [vmem:[#allocation2 + $0x34] sm:$0xf]
        %v609 = vld [vmem:[#allocation2 + $0x38] sm:$0xf]
        %v610 = vld [vmem:[#allocation2 + $0x3c] sm:$0xf]
        %v611 = vld [vmem:[#allocation2 + $0x40] sm:$0xf]
        %v612 = vld [vmem:[#allocation2 + $0x44] sm:$0xf]
        %v613 = vld [vmem:[#allocation2 + $0x48] sm:$0xf]
        %v614 = vld [vmem:[#allocation2 + $0x4c] sm:$0xf]
        %v615 = vld [vmem:[#allocation2 + $0x50] sm:$0xf]
        %v616 = vld [vmem:[#allocation2 + $0x54] sm:$0xf]
        %v617 = vld [vmem:[#allocation2 + $0x58] sm:$0xf]
        %v618 = vld [vmem:[#allocation2 + $0x5c] sm:$0xf]
        %v619 = vld [vmem:[#allocation2 + $0x60] sm:$0xf]
        %v620 = vld [vmem:[#allocation2 + $0x64] sm:$0xf]
        %v621 = vld [vmem:[#allocation2 + $0x68] sm:$0xf]
        %v622 = vld [vmem:[#allocation2 + $0x6c] sm:$0xf]
        %v623 = vld [vmem:[#allocation2 + $0x70] sm:$0xf]
        %v624 = vld [vmem:[#allocation2 + $0x74] sm:$0xf]
        %v625 = vld [vmem:[#allocation2 + $0x78] sm:$0xf]
        %v626 = vld [vmem:[#allocation2 + $0x7c] sm:$0xf]
        %v627 = vld [vmem:[#allocation3] sm:$0xf]
        %v628 = vld [vmem:[#allocation3 + $0x4] sm:$0xf]
        %v629 = vld [vmem:[#allocation3 + $0x8] sm:$0xf]
        %v630 = vld [vmem:[#allocation3 + $0xc] sm:$0xf]
        %v631 = vld [vmem:[#allocation3 + $0x10] sm:$0xf]
        %v632 = vld [vmem:[#allocation3 + $0x14] sm:$0xf]
        %v633 = vld [vmem:[#allocation3 + $0x18] sm:$0xf]
        %v634 = vld [vmem:[#allocation3 + $0x1c] sm:$0xf]
        %v635 = vld [vmem:[#allocation3 + $0x20] sm:$0xf]
        %v636 = vld [vmem:[#allocation3 + $0x24] sm:$0xf]
        %v637 = vld [vmem:[#allocation3 + $0x28] sm:$0xf]
        %v638 = vld [vmem:[#allocation3 + $0x2c] sm:$0xf]
        %v639 = vld [vmem:[#allocation3 + $0x30] sm:$0xf]
        %v640 = vld [vmem:[#allocation3 + $0x34] sm:$0xf]
        %v641 = vld [vmem:[#allocation3 + $0x38] sm:$0xf]
        %v642 = vld [vmem:[#allocation3 + $0x3c] sm:$0xf]
        %v675 = vunpack.c.l.b16 %v595
        %v676 = vunpack.c.l.b16 %v596
        %v677 = vunpack.c.l.b16 %v597
        %v678 = vunpack.c.l.b16 %v598
        %v679 = vunpack.c.l.b16 %v599
        %v680 = vunpack.c.l.b16 %v600
        %v681 = vunpack.c.l.b16 %v601
        %v682 = vunpack.c.l.b16 %v602
        %v683 = vunpack.c.l.b16 %v603
        %v684 = vunpack.c.l.b16 %v604
        %v685 = vunpack.c.l.b16 %v605
        %v686 = vunpack.c.l.b16 %v606
        %v687 = vunpack.c.l.b16 %v607
        %v688 = vunpack.c.l.b16 %v608
        %v689 = vunpack.c.l.b16 %v609
        %v690 = vunpack.c.l.b16 %v610
        %v691 = vunpack.c.l.b16 %v611
        %v692 = vunpack.c.l.b16 %v612
        %v693 = vunpack.c.l.b16 %v613
        %v694 = vunpack.c.l.b16 %v614
        %v695 = vunpack.c.l.b16 %v615
        %v696 = vunpack.c.l.b16 %v616
        %v697 = vunpack.c.l.b16 %v617
        %v698 = vunpack.c.l.b16 %v618
        %v699 = vunpack.c.l.b16 %v619
        %v700 = vunpack.c.l.b16 %v620
        %v701 = vunpack.c.l.b16 %v621
        %v702 = vunpack.c.l.b16 %v622
        %v703 = vunpack.c.l.b16 %v623
        %v704 = vunpack.c.l.b16 %v624
        %v705 = vunpack.c.l.b16 %v625
        %v706 = vunpack.c.l.b16 %v626
        %v707 = vpack.c.b16 %v676, %v675
        %v708 = vpack.c.b16 %v678, %v677
        %v709 = vpack.c.b16 %v680, %v679
        %v710 = vpack.c.b16 %v682, %v681
        %v711 = vpack.c.b16 %v684, %v683
        %v712 = vpack.c.b16 %v686, %v685
        %v713 = vpack.c.b16 %v688, %v687
        %v714 = vpack.c.b16 %v690, %v689
        %v715 = vpack.c.b16 %v692, %v691
        %v716 = vpack.c.b16 %v694, %v693
        %v717 = vpack.c.b16 %v696, %v695
        %v718 = vpack.c.b16 %v698, %v697
        %v719 = vpack.c.b16 %v700, %v699
        %v720 = vpack.c.b16 %v702, %v701
        %v721 = vpack.c.b16 %v704, %v703
        %v722 = vpack.c.b16 %v706, %v705
        %v755 = vunpack.c.l.b16 %v627
        %v756 = vunpack.c.l.b16 %v628
        %v757 = vunpack.c.l.b16 %v629
        %v758 = vunpack.c.l.b16 %v630
        %v759 = vunpack.c.l.b16 %v631
        %v760 = vunpack.c.l.b16 %v632
        %v761 = vunpack.c.l.b16 %v633
        %v762 = vunpack.c.l.b16 %v634
        %v763 = vunpack.c.l.b16 %v635
        %v764 = vunpack.c.l.b16 %v636
        %v765 = vunpack.c.l.b16 %v637
        %v766 = vunpack.c.l.b16 %v638
        %v767 = vunpack.c.l.b16 %v639
        %v768 = vunpack.c.l.b16 %v640
        %v769 = vunpack.c.l.b16 %v641
        %v770 = vunpack.c.l.b16 %v642
        %v771 = vpack.c.b16 %v756, %v755
        %v772 = vpack.c.b16 %v758, %v757
        %v773 = vpack.c.b16 %v760, %v759
        %v774 = vpack.c.b16 %v762, %v761
        %v775 = vpack.c.b16 %v764, %v763
        %v776 = vpack.c.b16 %v766, %v765
        %v777 = vpack.c.b16 %v768, %v767
        %v778 = vpack.c.b16 %v770, %v769
        %787 = vmatpush.bf16.msra.mxu0 %v778
        %788 = vmatpush.bf16.msra.mxu0 %v777
        %789 = vmatpush.bf16.msra.mxu0 %v776
        %790 = vmatpush.bf16.msra.mxu0 %v775
        %791 = vmatpush.bf16.msra.mxu0 %v774
        %792 = vmatpush.bf16.msra.mxu0 %v773
        %793 = vmatpush.bf16.msra.mxu0 %v772
        %794 = vmatpush.bf16.msra.mxu0 %v771
        %795 = vmatmul.bf16.gmra.mxu0 %v707
        %v796 = vpop.f32.mrf.mxu0
        %v797 = vadd.f32 0.0, %v796
        %v798 = vpop.f32.mrf.mxu0
        %v799 = vadd.f32 0.0, %v798
        %800 = vmatmul.bf16.gmra.mxu0 %v708
        %v801 = vpop.f32.mrf.mxu0
        %v802 = vadd.f32 0.0, %v801
        %v803 = vpop.f32.mrf.mxu0
        %v804 = vadd.f32 0.0, %v803
        %805 = vmatmul.bf16.gmra.mxu0 %v709
        %v806 = vpop.f32.mrf.mxu0
        %v807 = vadd.f32 0.0, %v806
        %v808 = vpop.f32.mrf.mxu0
        %v809 = vadd.f32 0.0, %v808
        %810 = vmatmul.bf16.gmra.mxu0 %v710
        %v811 = vpop.f32.mrf.mxu0
        %v812 = vadd.f32 0.0, %v811
        %v813 = vpop.f32.mrf.mxu0
        %v814 = vadd.f32 0.0, %v813
        %815 = vmatmul.bf16.gmra.mxu0 %v711
        %v816 = vpop.f32.mrf.mxu0
        %v817 = vadd.f32 0.0, %v816
        %v818 = vpop.f32.mrf.mxu0
        %v819 = vadd.f32 0.0, %v818
        %820 = vmatmul.bf16.gmra.mxu0 %v712
        %v821 = vpop.f32.mrf.mxu0
        %v822 = vadd.f32 0.0, %v821
        %v823 = vpop.f32.mrf.mxu0
        %v824 = vadd.f32 0.0, %v823
        %825 = vmatmul.bf16.gmra.mxu0 %v713
        %v826 = vpop.f32.mrf.mxu0
        %v827 = vadd.f32 0.0, %v826
        %v828 = vpop.f32.mrf.mxu0
        %v829 = vadd.f32 0.0, %v828
        %830 = vmatmul.bf16.gmra.mxu0 %v714
        %v831 = vpop.f32.mrf.mxu0
        %v832 = vadd.f32 0.0, %v831
        %v833 = vpop.f32.mrf.mxu0
        %v834 = vadd.f32 0.0, %v833
        %835 = vmatmul.bf16.gmra.mxu0 %v715
        %v836 = vpop.f32.mrf.mxu0
        %v837 = vadd.f32 0.0, %v836
        %v838 = vpop.f32.mrf.mxu0
        %v839 = vadd.f32 0.0, %v838
        %840 = vmatmul.bf16.gmra.mxu0 %v716
        %v841 = vpop.f32.mrf.mxu0
        %v842 = vadd.f32 0.0, %v841
        %v843 = vpop.f32.mrf.mxu0
        %v844 = vadd.f32 0.0, %v843
        %845 = vmatmul.bf16.gmra.mxu0 %v717
        %v846 = vpop.f32.mrf.mxu0
        %v847 = vadd.f32 0.0, %v846
        %v848 = vpop.f32.mrf.mxu0
        %v849 = vadd.f32 0.0, %v848
        %850 = vmatmul.bf16.gmra.mxu0 %v718
        %v851 = vpop.f32.mrf.mxu0
        %v852 = vadd.f32 0.0, %v851
        %v853 = vpop.f32.mrf.mxu0
        %v854 = vadd.f32 0.0, %v853
        %855 = vmatmul.bf16.gmra.mxu0 %v719
        %v856 = vpop.f32.mrf.mxu0
        %v857 = vadd.f32 0.0, %v856
        %v858 = vpop.f32.mrf.mxu0
        %v859 = vadd.f32 0.0, %v858
        %860 = vmatmul.bf16.gmra.mxu0 %v720
        %v861 = vpop.f32.mrf.mxu0
        %v862 = vadd.f32 0.0, %v861
        %v863 = vpop.f32.mrf.mxu0
        %v864 = vadd.f32 0.0, %v863
        %865 = vmatmul.bf16.gmra.mxu0 %v721
        %v866 = vpop.f32.mrf.mxu0
        %v867 = vadd.f32 0.0, %v866
        %v868 = vpop.f32.mrf.mxu0
        %v869 = vadd.f32 0.0, %v868
        %870 = vmatmul.bf16.gmra.mxu0 %v722
        %v871 = vpop.f32.mrf.mxu0
        %v872 = vadd.f32 0.0, %v871
        %v873 = vpop.f32.mrf.mxu0
        %v874 = vadd.f32 0.0, %v873
        %875 = vdwg.mxu0
        %v876 = vpack.c.bf16 %v797, %v797
        %v877 = vpack.c.bf16 %v799, %v799
        %v878 = vpack.c.bf16 %v802, %v802
        %v879 = vpack.c.bf16 %v804, %v804
        %v880 = vpack.c.bf16 %v807, %v807
        %v881 = vpack.c.bf16 %v809, %v809
        %v882 = vpack.c.bf16 %v812, %v812
        %v883 = vpack.c.bf16 %v814, %v814
        %v884 = vpack.c.bf16 %v817, %v817
        %v885 = vpack.c.bf16 %v819, %v819
        %v886 = vpack.c.bf16 %v822, %v822
        %v887 = vpack.c.bf16 %v824, %v824
        %v888 = vpack.c.bf16 %v827, %v827
        %v889 = vpack.c.bf16 %v829, %v829
        %v890 = vpack.c.bf16 %v832, %v832
        %v891 = vpack.c.bf16 %v834, %v834
        %v892 = vpack.c.bf16 %v837, %v837
        %v893 = vpack.c.bf16 %v839, %v839
        %v894 = vpack.c.bf16 %v842, %v842
        %v895 = vpack.c.bf16 %v844, %v844
        %v896 = vpack.c.bf16 %v847, %v847
        %v897 = vpack.c.bf16 %v849, %v849
        %v898 = vpack.c.bf16 %v852, %v852
        %v899 = vpack.c.bf16 %v854, %v854
        %v900 = vpack.c.bf16 %v857, %v857
        %v901 = vpack.c.bf16 %v859, %v859
        %v902 = vpack.c.bf16 %v862, %v862
        %v903 = vpack.c.bf16 %v864, %v864
        %v904 = vpack.c.bf16 %v867, %v867
        %v905 = vpack.c.bf16 %v869, %v869
        %v906 = vpack.c.bf16 %v872, %v872
        %v907 = vpack.c.bf16 %v874, %v874
        %908 = vst [vmem:[%s197] sm:$0xf] %v876
        %909 = vst [vmem:[%s197 + $0x4] sm:$0xf] %v877
        %910 = vst [vmem:[%s197 + $0x8] sm:$0xf] %v878
        %911 = vst [vmem:[%s197 + $0xc] sm:$0xf] %v879
        %912 = vst [vmem:[%s197 + $0x10] sm:$0xf] %v880
        %913 = vst [vmem:[%s197 + $0x14] sm:$0xf] %v881
        %914 = vst [vmem:[%s197 + $0x18] sm:$0xf] %v882
        %915 = vst [vmem:[%s197 + $0x1c] sm:$0xf] %v883
        %916 = vst [vmem:[%s197 + $0x20] sm:$0xf] %v884
        %917 = vst [vmem:[%s197 + $0x24] sm:$0xf] %v885
        %918 = vst [vmem:[%s197 + $0x28] sm:$0xf] %v886
        %919 = vst [vmem:[%s197 + $0x2c] sm:$0xf] %v887
        %920 = vst [vmem:[%s197 + $0x30] sm:$0xf] %v888
        %921 = vst [vmem:[%s197 + $0x34] sm:$0xf] %v889
        %922 = vst [vmem:[%s197 + $0x38] sm:$0xf] %v890
        %923 = vst [vmem:[%s197 + $0x3c] sm:$0xf] %v891
        %924 = vst [vmem:[%s197 + $0x40] sm:$0xf] %v892
        %925 = vst [vmem:[%s197 + $0x44] sm:$0xf] %v893
        %926 = vst [vmem:[%s197 + $0x48] sm:$0xf] %v894
        %927 = vst [vmem:[%s197 + $0x4c] sm:$0xf] %v895
        %928 = vst [vmem:[%s197 + $0x50] sm:$0xf] %v896
        %929 = vst [vmem:[%s197 + $0x54] sm:$0xf] %v897
        %930 = vst [vmem:[%s197 + $0x58] sm:$0xf] %v898
        %931 = vst [vmem:[%s197 + $0x5c] sm:$0xf] %v899
        %932 = vst [vmem:[%s197 + $0x60] sm:$0xf] %v900
        %933 = vst [vmem:[%s197 + $0x64] sm:$0xf] %v901
        %934 = vst [vmem:[%s197 + $0x68] sm:$0xf] %v902
        %935 = vst [vmem:[%s197 + $0x6c] sm:$0xf] %v903
        %936 = vst [vmem:[%s197 + $0x70] sm:$0xf] %v904
        %937 = vst [vmem:[%s197 + $0x74] sm:$0xf] %v905
        %938 = vst [vmem:[%s197 + $0x78] sm:$0xf] %v906
        %939 = vst [vmem:[%s197 + $0x7c] sm:$0xf] %v907
        %s940 = sand.u32 %s99, 1
        %s941 = scalar_lea.sflag [#allocation5], %s940
        %s942 = sand.u32 %s99, 1
        %s943 = smul.addr %s942, 128
        %s944 = scalar_lea.vmem [#allocation6], %s943
        // Predicated region
        $region37: #{tpu_custom_call.1} parent=31 // pred_check
          %p945 = pneg %p109
        $region38: #{tpu_custom_call.1} parent=31 // pred_check_branch
          %947 = sbr.rel (%p945) target = $region40
        $region39: #{tpu_custom_call.1} parent=31 // pred_region
          %s948 = smul.u32 32, %s18
          %950 = vsyncadd %s941, 0
          %s951 = smul.addr %s948, 4
          %s952 = scalar_lea.hbm %s3, %s951
          %s953 = sshll.u32 %s944, 4
          %s954 = int_to_ptr.vmem [resolvable:$true] %s953
          %s955 = sshll.u32 %s952, 4
          %s956 = int_to_ptr.hbm [resolvable:$true] %s955
          %961 = dma.vmem_to_hbm [thread:$0]  %s954, 2048, %s956, %s941, 64, 64, 4
        $region40: #{tpu_custom_call.1} parent=31 // pred_fallthru
          _
      $region32: #{tpu_custom_call.1} parent=5 // pred_fallthru
        _
      %p962 = scmp.le.s32.totalorder 2, %s13
      // Predicated region
      $region41: #{tpu_custom_call.1} parent=5 // pred_check
        %p963 = pneg %p962
      $region42: #{tpu_custom_call.1} parent=5 // pred_check_branch
        %965 = sbr.rel (%p963) target = $region44
      $region43: #{tpu_custom_call.1} parent=5 // pred_region
        %s966 = ssub.s32 %s13, 2
        // Predicated region
        $region45: #{tpu_custom_call.1} parent=43 // pred_check
          %p967 = pneg %p115
        $region46: #{tpu_custom_call.1} parent=43 // pred_check_branch
          %969 = sbr.rel (%p967) target = $region48
        $region47: #{tpu_custom_call.1} parent=43 // pred_region
          %s970 = sand.u32 %s100, 1
          %s971 = scalar_lea.sflag [#allocation5], %s970
          %s972 = sand.u32 %s100, 1
          %s973 = smul.addr %s972, 128
          %s974 = scalar_lea.vmem [#allocation6], %s973
          %976 = dma.done %s971, 2048
        $region48: #{tpu_custom_call.1} parent=43 // pred_fallthru
          _
      $region44: #{tpu_custom_call.1} parent=5 // pred_fallthru
        _
    $region6: #{tpu_custom_call.1} parent=1 // loop_footer
      %s17 = sadd.s32 1, %s13
    $region7: #{tpu_custom_call.1} parent=1 // loop_footer_branch
      %12 = sbr.rel target = $region3
    $region8: #{tpu_custom_call.1} parent=1 // loop_exit
      _
    %977 = vsyncpa [#allocation4], 1
    %s978 = scalar_lea.sflag [#allocation4], 1
    %979 = vsyncpa %s978, 1
    %980 = vsyncpa [#allocation5], 1
    %s981 = scalar_lea.sflag [#allocation5], 1
    %982 = vsyncpa %s981, 1

</llo_original>
